<compile_context>
chip_gen: v5e
topology: v5e:2x2
jax: 0.10.0
libtpu: 0.0.40
codegen_flags: <defaults>
</compile_context>

<pallas_src>
import functools

import jax
import jax.numpy as jnp
from jax.experimental import pallas as pl
from jax.experimental.pallas import tpu as pltpu

EPS = 1e-5


def _residual_block_kernel(drop_threshold, keep_scale,
                           x_ref,        # (B, D) f32
                           w1_ref,       # (D, H) bf16
                           g1_ref,       # (1, H) f32
                           be1_ref,      # (1, H) f32
                           w2_ref,       # (H, D) bf16
                           g2_ref,       # (1, D) f32
                           be2_ref,      # (1, D) f32
                           *rest):       # [bits_ref (B, H) u32,] out_ref (B, D) f32
    if drop_threshold is None:
        bits_ref = None
        (out_ref,) = rest
    else:
        bits_ref, out_ref = rest

    x = x_ref[...]

    # ---- linear1 on the MXU (bf16 inputs, f32 accumulate).
    # nn.Linear bias b1 is omitted: it cancels exactly under the batch-stat BN1
    # that follows ((h + b) - mean(h + b) == h - mean(h)).
    h = jnp.dot(x.astype(jnp.bfloat16), w1_ref[...],
                preferred_element_type=jnp.float32)                      # (B, H)

    # ---- bn1 (training mode: batch mean, biased variance) — one pass over h.
    mean1 = jnp.mean(h, axis=0, keepdims=True)
    var1 = jnp.mean(h * h, axis=0, keepdims=True) - mean1 * mean1
    h = (h - mean1) * jax.lax.rsqrt(var1 + EPS) * g1_ref[...] + be1_ref[...]

    # ---- ReLU ----
    h = jnp.maximum(h, 0.0)

    # ---- dropout: integer threshold compare on host-supplied uint32 bits.
    if bits_ref is not None:
        keep = bits_ref[...] >= jnp.uint32(drop_threshold)
        h = jnp.where(keep, h * keep_scale, 0.0)

    # ---- linear2 (bias b2 omitted; cancels under batch-stat BN2).
    o = jnp.dot(h.astype(jnp.bfloat16), w2_ref[...],
                preferred_element_type=jnp.float32)                      # (B, D)

    # ---- bn2 ----
    mean2 = jnp.mean(o, axis=0, keepdims=True)
    var2 = jnp.mean(o * o, axis=0, keepdims=True) - mean2 * mean2
    o = (o - mean2) * jax.lax.rsqrt(var2 + EPS) * g2_ref[...] + be2_ref[...]

    # ---- residual add + ReLU ----
    out_ref[...] = jnp.maximum(o + x, 0.0)


def residual_block_forward(x, params, *, p_drop=0.3, rng_key=None):
    """Fused ResidualBlock forward. x: (B, D) float32, returns (B, D) float32."""
    B, D = x.shape
    H = params["w1"].shape[1]
    assert B >= 2, "training-mode BatchNorm1d needs batch >= 2"
    assert 0.0 <= p_drop < 1.0

    # Pre-cast weights to bf16: native MXU input dtype, halves weight DMA bytes.
    w1 = params["w1"].astype(jnp.bfloat16)
    w2 = params["w2"].astype(jnp.bfloat16)

    # This fused design keeps everything resident in VMEM (no grid).
    # TODO(synk): tile over the hidden dim with a grid + BlockSpecs (and an f32 VMEM
    #             accumulator for linear2) once the resident footprint approaches the
    #             scoped-VMEM limit (~32 MiB on v7x); irrelevant at these sizes.
    approx_vmem = (2 * B * H + 3 * B * D) * 4 + (w1.size + w2.size) * 2 + B * H * 4
    assert approx_vmem < 32 * 1024 * 1024, "untiled kernel would exceed VMEM; add tiling"

    inputs = [x, w1, params["g1"], params["be1"], w2, params["g2"], params["be2"]]

    if p_drop > 0.0:
        if rng_key is None:
            rng_key = jax.random.PRNGKey(0)
        bits = jax.random.bits(rng_key, (B, H), dtype=jnp.uint32)
        inputs.append(bits)
        drop_threshold = min(int(round(p_drop * 2.0 ** 32)), 2 ** 32 - 1)
        keep_scale = 1.0 / (1.0 - p_drop)
    else:
        drop_threshold = None
        keep_scale = 1.0

    kernel = functools.partial(_residual_block_kernel, drop_threshold, keep_scale)
    vmem = pl.BlockSpec(memory_space=pltpu.MemorySpace.VMEM)

    return pl.pallas_call(
        kernel,
        out_shape=jax.ShapeDtypeStruct((B, D), jnp.float32),
        in_specs=[vmem] * len(inputs),
        out_specs=vmem,
    )(*inputs)


def init_params(key, input_size, hidden_size):
    """nn.Linear default init (U(-1/sqrt(fan_in), 1/sqrt(fan_in))), BN1d gamma=1/beta=0.
    Weights stored as (in, out) so the kernel computes x @ W."""
    k1, k2, k3, k4 = jax.random.split(key, 4)
    b1 = 1.0 / jnp.sqrt(input_size)
    b2 = 1.0 / jnp.sqrt(hidden_size)
    return {
        "w1": jax.random.uniform(k1, (input_size, hidden_size), jnp.float32, -b1, b1),
        "b1": jax.random.uniform(k2, (1, hidden_size), jnp.float32, -b1, b1),
        "g1": jnp.ones((1, hidden_size), jnp.float32),
        "be1": jnp.zeros((1, hidden_size), jnp.float32),
        "w2": jax.random.uniform(k3, (hidden_size, input_size), jnp.float32, -b2, b2),
        "b2": jax.random.uniform(k4, (1, input_size), jnp.float32, -b2, b2),
        "g2": jnp.ones((1, input_size), jnp.float32),
        "be2": jnp.zeros((1, input_size), jnp.float32),
    }


def _mirror_reference(x, params, *, bits=None, p_drop=0.0):
    """Pure-JAX mirror of the kernel math (bf16 dots, no biases, one-pass var)."""
    w1 = params["w1"].astype(jnp.bfloat16)
    w2 = params["w2"].astype(jnp.bfloat16)
    h = jnp.dot(x.astype(jnp.bfloat16), w1, preferred_element_type=jnp.float32)
    m1 = h.mean(0, keepdims=True)
    v1 = (h * h).mean(0, keepdims=True) - m1 * m1
    h = (h - m1) * jax.lax.rsqrt(v1 + EPS) * params["g1"] + params["be1"]
    h = jnp.maximum(h, 0.0)
    if p_drop > 0.0:
        thr = jnp.uint32(min(int(round(p_drop * 2.0 ** 32)), 2 ** 32 - 1))
        h = jnp.where(bits >= thr, h / (1.0 - p_drop), 0.0)
    o = jnp.dot(h.astype(jnp.bfloat16), w2, preferred_element_type=jnp.float32)
    m2 = o.mean(0, keepdims=True)
    v2 = (o * o).mean(0, keepdims=True) - m2 * m2
    o = (o - m2) * jax.lax.rsqrt(v2 + EPS) * params["g2"] + params["be2"]
    return jnp.maximum(o + x, 0.0)


def _pytorch_f32_reference(x, params):
    """Full-precision, bias-including reference matching the PyTorch module (no dropout)."""
    h = x @ params["w1"] + params["b1"]
    m1 = h.mean(0, keepdims=True)
    v1 = ((h - m1) ** 2).mean(0, keepdims=True)
    h = (h - m1) * jax.lax.rsqrt(v1 + EPS) * params["g1"] + params["be1"]
    h = jnp.maximum(h, 0.0)
    o = h @ params["w2"] + params["b2"]
    m2 = o.mean(0, keepdims=True)
    v2 = ((o - m2) ** 2).mean(0, keepdims=True)
    o = (o - m2) * jax.lax.rsqrt(v2 + EPS) * params["g2"] + params["be2"]
    return jnp.maximum(o + x, 0.0)


if __name__ == "__main__":
    # >=128 activation rows per matmul to give the MXU a reasonable fill.
    BATCH, INPUT_SIZE, HIDDEN_SIZE = 128, 128, 256

    key = jax.random.PRNGKey(0)
    kx, kp, kd = jax.random.split(key, 3)
    x = jax.random.normal(kx, (BATCH, INPUT_SIZE), dtype=jnp.float32)
    params = init_params(kp, INPUT_SIZE, HIDDEN_SIZE)

    # 1) Tight check of the Pallas lowering vs. a mirror reference (dropout off).
    out_nodrop = jax.block_until_ready(residual_block_forward(x, params, p_drop=0.0))
    ref_mirror = _mirror_reference(x, params)
    assert jnp.allclose(out_nodrop, ref_mirror, atol=1e-3, rtol=1e-3), "mismatch vs mirror ref"

    # 2) Looser check vs. the full-precision PyTorch-style reference (validates that
    #    the bias/rescale cancellation + bf16 matmuls preserve module semantics).
    ref_f32 = _pytorch_f32_reference(x, params)
    assert jnp.allclose(out_nodrop, ref_f32, atol=1e-1, rtol=1e-1), "mismatch vs f32 ref"

    # 3) Training-mode forward with dropout p=0.3 (deterministic host-side bits),
    #    checked against the mirror reference using the same bits.
    out_drop = jax.block_until_ready(residual_block_forward(x, params, p_drop=0.3, rng_key=kd))
    bits = jax.random.bits(kd, (BATCH, HIDDEN_SIZE), dtype=jnp.uint32)
    ref_drop = _mirror_reference(x, params, bits=bits, p_drop=0.3)
    assert out_drop.shape == (BATCH, INPUT_SIZE)
    assert bool(jnp.isfinite(out_drop).all())
    assert jnp.allclose(out_drop, ref_drop, atol=1e-3, rtol=1e-3), "dropout path mismatch"

    print("KERNEL_OK")
</pallas_src>

<mosaic_0001>
module attributes {stable_mosaic.version = 11 : i64} {
  func.func @_residual_block_kernel(%arg0: memref<128x128xf32, #tpu.memory_space<vmem>>, %arg1: memref<128x256xbf16, #tpu.memory_space<vmem>>, %arg2: memref<1x256xf32, #tpu.memory_space<vmem>>, %arg3: memref<1x256xf32, #tpu.memory_space<vmem>>, %arg4: memref<256x128xbf16, #tpu.memory_space<vmem>>, %arg5: memref<1x128xf32, #tpu.memory_space<vmem>>, %arg6: memref<1x128xf32, #tpu.memory_space<vmem>>, %arg7: memref<128x128xf32, #tpu.memory_space<vmem>>) attributes {dimension_semantics = [], scalar_prefetch = 0 : i64, scratch_operands = 0 : i64, tpu.core_type = #tpu.core_type<tc>} {
    %c0 = arith.constant 0 : index
    %c0_0 = arith.constant 0 : index
    %0 = vector.load %arg0[%c0, %c0_0] : memref<128x128xf32, #tpu.memory_space<vmem>>, vector<128x128xf32>
    %1 = arith.truncf %0 : vector<128x128xf32> to vector<128x128xbf16>
    %c0_1 = arith.constant 0 : index
    %c0_2 = arith.constant 0 : index
    %2 = vector.load %arg1[%c0_1, %c0_2] : memref<128x256xbf16, #tpu.memory_space<vmem>>, vector<128x256xbf16>
    %cst = arith.constant dense<0.000000e+00> : vector<128x256xf32>
    %3 = tpu.matmul %1, %2, %cst {dimension_numbers = #tpu.dot_dimension_numbers<[1], [0], [0], [1], [0, 0, 1, 1], [], []>} : vector<128x128xbf16>, vector<128x256xbf16>, vector<128x256xf32> -> vector<128x256xf32>
    %cst_3 = arith.constant dense<0.000000e+00> : vector<256xf32>
    %4 = vector.multi_reduction <add>, %3, %cst_3 [0] : vector<128x256xf32> to vector<256xf32>
    %5 = vector.shape_cast %4 : vector<256xf32> to vector<1x256xf32>
    %cst_4 = arith.constant 1.280000e+02 : f32
    %6 = vector.broadcast %cst_4 : f32 to vector<1x256xf32>
    %7 = arith.divf %5, %6 : vector<1x256xf32>
    %8 = arith.mulf %3, %3 : vector<128x256xf32>
    %cst_5 = arith.constant dense<0.000000e+00> : vector<256xf32>
    %9 = vector.multi_reduction <add>, %8, %cst_5 [0] : vector<128x256xf32> to vector<256xf32>
    %10 = vector.shape_cast %9 : vector<256xf32> to vector<1x256xf32>
    %cst_6 = arith.constant 1.280000e+02 : f32
    %11 = vector.broadcast %cst_6 : f32 to vector<1x256xf32>
    %12 = arith.divf %10, %11 : vector<1x256xf32>
    %13 = arith.mulf %7, %7 : vector<1x256xf32>
    %14 = arith.subf %12, %13 : vector<1x256xf32>
    %15 = vector.broadcast %7 : vector<1x256xf32> to vector<128x256xf32>
    %16 = arith.subf %3, %15 : vector<128x256xf32>
    %cst_7 = arith.constant 9.99999974E-6 : f32
    %17 = vector.broadcast %cst_7 : f32 to vector<1x256xf32>
    %18 = arith.addf %14, %17 : vector<1x256xf32>
    %19 = math.rsqrt %18 : vector<1x256xf32>
    %20 = vector.broadcast %19 : vector<1x256xf32> to vector<128x256xf32>
    %21 = arith.mulf %16, %20 : vector<128x256xf32>
    %c0_8 = arith.constant 0 : index
    %c0_9 = arith.constant 0 : index
    %22 = vector.load %arg2[%c0_8, %c0_9] : memref<1x256xf32, #tpu.memory_space<vmem>>, vector<1x256xf32>
    %23 = vector.broadcast %22 : vector<1x256xf32> to vector<128x256xf32>
    %24 = arith.mulf %21, %23 : vector<128x256xf32>
    %c0_10 = arith.constant 0 : index
    %c0_11 = arith.constant 0 : index
    %25 = vector.load %arg3[%c0_10, %c0_11] : memref<1x256xf32, #tpu.memory_space<vmem>>, vector<1x256xf32>
    %26 = vector.broadcast %25 : vector<1x256xf32> to vector<128x256xf32>
    %27 = arith.addf %24, %26 : vector<128x256xf32>
    %cst_12 = arith.constant 0.000000e+00 : f32
    %28 = vector.broadcast %cst_12 : f32 to vector<128x256xf32>
    %29 = arith.maximumf %27, %28 : vector<128x256xf32>
    %30 = arith.truncf %29 : vector<128x256xf32> to vector<128x256xbf16>
    %c0_13 = arith.constant 0 : index
    %c0_14 = arith.constant 0 : index
    %31 = vector.load %arg4[%c0_13, %c0_14] : memref<256x128xbf16, #tpu.memory_space<vmem>>, vector<256x128xbf16>
    %cst_15 = arith.constant dense<0.000000e+00> : vector<128x128xf32>
    %32 = tpu.matmul %30, %31, %cst_15 {dimension_numbers = #tpu.dot_dimension_numbers<[1], [0], [0], [1], [0, 0, 1, 1], [], []>} : vector<128x256xbf16>, vector<256x128xbf16>, vector<128x128xf32> -> vector<128x128xf32>
    %cst_16 = arith.constant dense<0.000000e+00> : vector<128xf32>
    %33 = vector.multi_reduction <add>, %32, %cst_16 [0] : vector<128x128xf32> to vector<128xf32>
    %34 = vector.shape_cast %33 : vector<128xf32> to vector<1x128xf32>
    %cst_17 = arith.constant 1.280000e+02 : f32
    %35 = vector.broadcast %cst_17 : f32 to vector<1x128xf32>
    %36 = arith.divf %34, %35 : vector<1x128xf32>
    %37 = arith.mulf %32, %32 : vector<128x128xf32>
    %cst_18 = arith.constant dense<0.000000e+00> : vector<128xf32>
    %38 = vector.multi_reduction <add>, %37, %cst_18 [0] : vector<128x128xf32> to vector<128xf32>
    %39 = vector.shape_cast %38 : vector<128xf32> to vector<1x128xf32>
    %cst_19 = arith.constant 1.280000e+02 : f32
    %40 = vector.broadcast %cst_19 : f32 to vector<1x128xf32>
    %41 = arith.divf %39, %40 : vector<1x128xf32>
    %42 = arith.mulf %36, %36 : vector<1x128xf32>
    %43 = arith.subf %41, %42 : vector<1x128xf32>
    %44 = vector.broadcast %36 : vector<1x128xf32> to vector<128x128xf32>
    %45 = arith.subf %32, %44 : vector<128x128xf32>
    %cst_20 = arith.constant 9.99999974E-6 : f32
    %46 = vector.broadcast %cst_20 : f32 to vector<1x128xf32>
    %47 = arith.addf %43, %46 : vector<1x128xf32>
    %48 = math.rsqrt %47 : vector<1x128xf32>
    %49 = vector.broadcast %48 : vector<1x128xf32> to vector<128x128xf32>
    %50 = arith.mulf %45, %49 : vector<128x128xf32>
    %c0_21 = arith.constant 0 : index
    %c0_22 = arith.constant 0 : index
    %51 = vector.load %arg5[%c0_21, %c0_22] : memref<1x128xf32, #tpu.memory_space<vmem>>, vector<1x128xf32>
    %52 = vector.broadcast %51 : vector<1x128xf32> to vector<128x128xf32>
    %53 = arith.mulf %50, %52 : vector<128x128xf32>
    %c0_23 = arith.constant 0 : index
    %c0_24 = arith.constant 0 : index
    %54 = vector.load %arg6[%c0_23, %c0_24] : memref<1x128xf32, #tpu.memory_space<vmem>>, vector<1x128xf32>
    %55 = vector.broadcast %54 : vector<1x128xf32> to vector<128x128xf32>
    %56 = arith.addf %53, %55 : vector<128x128xf32>
    %57 = arith.addf %56, %0 : vector<128x128xf32>
    %cst_25 = arith.constant 0.000000e+00 : f32
    %58 = vector.broadcast %cst_25 : f32 to vector<128x128xf32>
    %59 = arith.maximumf %57, %58 : vector<128x128xf32>
    %c0_26 = arith.constant 0 : index
    %c0_27 = arith.constant 0 : index
    %60 = vector.load %arg7[%c0_26, %c0_27] : memref<128x128xf32, #tpu.memory_space<vmem>>, vector<128x128xf32>
    tpu.vector_store %arg7[%c0_26, %c0_27], %59 {strides = array<i32>} : memref<128x128xf32, #tpu.memory_space<vmem>>, vector<128x128xf32>,
    return
  }
}

</mosaic_0001>

<llo_original>
// kernel: tpu_custom_call.1
$region0: #{tpu_custom_call.1}
  #allocation0 [shape = 'u32[]', space=smem, size = 0x4, offset = 0x4, fixed_abs, tag = 'smem constant byte address 0x4 - core index']
  #allocation1 [shape = 'u32[72,128]{1,0:T(1,128)}', space=vmem, size = 0x9000, scoped, tag = 'internal scratch']
  %s0 = inlined_call_operand.hbm [shape: f32[128,128], index: 0, kind: input, shape index: {}]
  %s1 = inlined_call_operand.hbm [shape: bf16[128,256], index: 1, kind: input, shape index: {}]
  %s2 = inlined_call_operand.hbm [shape: f32[1,256], index: 2, kind: input, shape index: {}]
  %s3 = inlined_call_operand.vmem [shape: f32[1,256], index: 3, kind: input, shape index: {}]
  %s4 = inlined_call_operand.hbm [shape: bf16[256,128], index: 4, kind: input, shape index: {}]
  %s5 = inlined_call_operand.vmem [shape: f32[1,128], index: 5, kind: input, shape index: {}]
  %s6 = inlined_call_operand.vmem [shape: f32[1,128], index: 6, kind: input, shape index: {}]
  %s7 = inlined_call_operand.hbm [shape: f32[128,128], index: 7, kind: output, shape index: {}]
  %s8 = sld [smem:[#allocation0]]
  $region54: #{tpu_custom_call.1} parent=0
    _
  %s10 = ssub.s32 1, %s8
  %s11 = scalar_select 0, %s10, %s8
  $region1: #{tpu_custom_call.1} parent=0
    #allocation2 [shape = 'u8[65536]{0}', space=vmem, size = 0x10000, scoped, tag = 'input window, operand 0, single buffered']
    #allocation3 [shape = 's32[1]{0}', space=sflag, size = 0x4, scoped, tag = 'scoped memory for tpu_custom_call.1']
    #allocation4 [shape = 's32[1]{0}', space=sflag, size = 0x4, scoped, tag = 'scoped memory for tpu_custom_call.1']
    #allocation5 [shape = 'u8[65536]{0}', space=vmem, size = 0x10000, scoped, tag = 'input window, operand 1, single buffered']
    #allocation6 [shape = 's32[1]{0}', space=sflag, size = 0x4, scoped, tag = 'scoped memory for tpu_custom_call.1']
    #allocation7 [shape = 'u8[1024]{0}', space=vmem, size = 0x400, scoped, tag = 'input window, operand 2, single buffered']
    #allocation8 [shape = 'u8[65536]{0}', space=vmem, size = 0x10000, scoped, tag = 'input window, operand 4, single buffered']
    #allocation9 [shape = 's32[1]{0}', space=sflag, size = 0x4, scoped, tag = 'scoped memory for tpu_custom_call.1']
    #allocation10 [shape = 'u8[65536]{0}', space=vmem, size = 0x10000, scoped, tag = 'output window, operand 0, single buffered']
    %12 = vsyncpa [#allocation3], 0
    %13 = vsyncpa [#allocation6], 0
    %14 = vsyncpa [#allocation9], 0
    %15 = vsyncpa [#allocation4], 0
    // Predicated region
    $region2: #{tpu_custom_call.1} parent=1 // pred_check
      _
    $region3: #{tpu_custom_call.1} parent=1 // pred_check_branch
      %17 = sbr.rel (0) target = $region5
    $region4: #{tpu_custom_call.1} parent=1 // pred_region
      %19 = vsyncadd [#allocation3], 0
      %s20 = sshll.u32 %s0, 4
      %s21 = int_to_ptr.hbm [resolvable:$true] %s20
      %s22 = sshll.u32 [#allocation2], 4
      %s23 = int_to_ptr.vmem [resolvable:$true] %s22
      %28 = dma.hbm_to_vmem [thread:$0]  %s21, 2048, %s23, [#allocation3], 128, 128, 8
    $region5: #{tpu_custom_call.1} parent=1 // pred_fallthru
      _
    // Predicated region
    $region6: #{tpu_custom_call.1} parent=1 // pred_check
      _
    $region7: #{tpu_custom_call.1} parent=1 // pred_check_branch
      %30 = sbr.rel (0) target = $region9
    $region8: #{tpu_custom_call.1} parent=1 // pred_region
      %32 = vsyncadd [#allocation6], 0
      %s33 = sshll.u32 %s1, 4
      %s34 = int_to_ptr.hbm [resolvable:$true] %s33
      %s35 = sshll.u32 [#allocation5], 4
      %s36 = int_to_ptr.vmem [resolvable:$true] %s35
      %41 = dma.hbm_to_vmem [thread:$0]  %s34, 2048, %s36, [#allocation6], 128, 128, 8
    $region9: #{tpu_custom_call.1} parent=1 // pred_fallthru
      _
    // Predicated region
    $region10: #{tpu_custom_call.1} parent=1 // pred_check
      _
    $region11: #{tpu_custom_call.1} parent=1 // pred_check_branch
      %43 = sbr.rel (0) target = $region13
    $region12: #{tpu_custom_call.1} parent=1 // pred_region
      %45 = vsyncadd [#allocation6], 0
      %s47 = sshll.u32 %s2, 4
      %s48 = int_to_ptr.hbm [resolvable:$true] %s47
      %s49 = sshll.u32 [#allocation7], 4
      %s50 = int_to_ptr.vmem [resolvable:$true] %s49
      %52 = dma.hbm_to_vmem [thread:$0]  %s48, 32, %s50, [#allocation6]
    $region13: #{tpu_custom_call.1} parent=1 // pred_fallthru
      _
    // Predicated region
    $region14: #{tpu_custom_call.1} parent=1 // pred_check
      _
    $region15: #{tpu_custom_call.1} parent=1 // pred_check_branch
      %54 = sbr.rel (0) target = $region17
    $region16: #{tpu_custom_call.1} parent=1 // pred_region
      _
    $region17: #{tpu_custom_call.1} parent=1 // pred_fallthru
      _
    // Predicated region
    $region18: #{tpu_custom_call.1} parent=1 // pred_check
      _
    $region19: #{tpu_custom_call.1} parent=1 // pred_check_branch
      %56 = sbr.rel (0) target = $region21
    $region20: #{tpu_custom_call.1} parent=1 // pred_region
      %58 = vsyncadd [#allocation9], 0
      %s59 = sshll.u32 %s4, 4
      %s60 = int_to_ptr.hbm [resolvable:$true] %s59
      %s61 = sshll.u32 [#allocation8], 4
      %s62 = int_to_ptr.vmem [resolvable:$true] %s61
      %67 = dma.hbm_to_vmem [thread:$0]  %s60, 2048, %s62, [#allocation9], 64, 64, 4
    $region21: #{tpu_custom_call.1} parent=1 // pred_fallthru
      _
    // Predicated region
    $region22: #{tpu_custom_call.1} parent=1 // pred_check
      _
    $region23: #{tpu_custom_call.1} parent=1 // pred_check_branch
      %69 = sbr.rel (0) target = $region25
    $region24: #{tpu_custom_call.1} parent=1 // pred_region
      _
    $region25: #{tpu_custom_call.1} parent=1 // pred_fallthru
      _
    // Predicated region
    $region26: #{tpu_custom_call.1} parent=1 // pred_check
      _
    $region27: #{tpu_custom_call.1} parent=1 // pred_check_branch
      %71 = sbr.rel (0) target = $region29
    $region28: #{tpu_custom_call.1} parent=1 // pred_region
      _
    $region29: #{tpu_custom_call.1} parent=1 // pred_fallthru
      _
    // Predicated region
    $region30: #{tpu_custom_call.1} parent=1 // pred_check
      _
    $region31: #{tpu_custom_call.1} parent=1 // pred_check_branch
      %73 = sbr.rel (0) target = $region33
    $region32: #{tpu_custom_call.1} parent=1 // pred_region
      %75 = dma.done [#allocation3], 2048
    $region33: #{tpu_custom_call.1} parent=1 // pred_fallthru
      _
    // Predicated region
    $region34: #{tpu_custom_call.1} parent=1 // pred_check
      _
    $region35: #{tpu_custom_call.1} parent=1 // pred_check_branch
      %77 = sbr.rel (0) target = $region37
    $region36: #{tpu_custom_call.1} parent=1 // pred_region
      %79 = dma.done [#allocation6], 2048
    $region37: #{tpu_custom_call.1} parent=1 // pred_fallthru
      _
    // Predicated region
    $region38: #{tpu_custom_call.1} parent=1 // pred_check
      _
    $region39: #{tpu_custom_call.1} parent=1 // pred_check_branch
      %81 = sbr.rel (0) target = $region41
    $region40: #{tpu_custom_call.1} parent=1 // pred_region
      %83 = dma.done [#allocation6], 32
    $region41: #{tpu_custom_call.1} parent=1 // pred_fallthru
      _
    // Predicated region
    $region42: #{tpu_custom_call.1} parent=1 // pred_check
      _
    $region43: #{tpu_custom_call.1} parent=1 // pred_check_branch
      %85 = sbr.rel (0) target = $region45
    $region44: #{tpu_custom_call.1} parent=1 // pred_region
      %87 = dma.done [#allocation9], 2048
    $region45: #{tpu_custom_call.1} parent=1 // pred_fallthru
      _
    %v88 = vld [vmem:[#allocation2] sm:$0xff]
    %v89 = vld [vmem:[#allocation2 + $0x8] sm:$0xff]
    %v90 = vld [vmem:[#allocation2 + $0x10] sm:$0xff]
    %v91 = vld [vmem:[#allocation2 + $0x18] sm:$0xff]
    %v92 = vld [vmem:[#allocation2 + $0x20] sm:$0xff]
    %v93 = vld [vmem:[#allocation2 + $0x28] sm:$0xff]
    %v94 = vld [vmem:[#allocation2 + $0x30] sm:$0xff]
    %v95 = vld [vmem:[#allocation2 + $0x38] sm:$0xff]
    %v96 = vld [vmem:[#allocation2 + $0x40] sm:$0xff]
    %v97 = vld [vmem:[#allocation2 + $0x48] sm:$0xff]
    %v98 = vld [vmem:[#allocation2 + $0x50] sm:$0xff]
    %v99 = vld [vmem:[#allocation2 + $0x58] sm:$0xff]
    %v100 = vld [vmem:[#allocation2 + $0x60] sm:$0xff]
    %v101 = vld [vmem:[#allocation2 + $0x68] sm:$0xff]
    %v102 = vld [vmem:[#allocation2 + $0x70] sm:$0xff]
    %v103 = vld [vmem:[#allocation2 + $0x78] sm:$0xff]
    %v104 = vpack.c.bf16 %v89, %v88
    %v105 = vpack.c.bf16 %v91, %v90
    %v106 = vpack.c.bf16 %v93, %v92
    %v107 = vpack.c.bf16 %v95, %v94
    %v108 = vpack.c.bf16 %v97, %v96
    %v109 = vpack.c.bf16 %v99, %v98
    %v110 = vpack.c.bf16 %v101, %v100
    %v111 = vpack.c.bf16 %v103, %v102
    %v112 = vld [vmem:[#allocation5] sm:$0xff]
    %v113 = vld [vmem:[#allocation5 + $0x8] sm:$0xff]
    %v114 = vld [vmem:[#allocation5 + $0x10] sm:$0xff]
    %v115 = vld [vmem:[#allocation5 + $0x18] sm:$0xff]
    %v116 = vld [vmem:[#allocation5 + $0x20] sm:$0xff]
    %v117 = vld [vmem:[#allocation5 + $0x28] sm:$0xff]
    %v118 = vld [vmem:[#allocation5 + $0x30] sm:$0xff]
    %v119 = vld [vmem:[#allocation5 + $0x38] sm:$0xff]
    %v120 = vld [vmem:[#allocation5 + $0x40] sm:$0xff]
    %v121 = vld [vmem:[#allocation5 + $0x48] sm:$0xff]
    %v122 = vld [vmem:[#allocation5 + $0x50] sm:$0xff]
    %v123 = vld [vmem:[#allocation5 + $0x58] sm:$0xff]
    %v124 = vld [vmem:[#allocation5 + $0x60] sm:$0xff]
    %v125 = vld [vmem:[#allocation5 + $0x68] sm:$0xff]
    %v126 = vld [vmem:[#allocation5 + $0x70] sm:$0xff]
    %v127 = vld [vmem:[#allocation5 + $0x78] sm:$0xff]
    %v144 = vunpack.c.l.b16 %v112
    %v145 = vunpack.c.h.b16 %v112
    %v146 = vunpack.c.l.b16 %v113
    %v147 = vunpack.c.h.b16 %v113
    %v148 = vunpack.c.l.b16 %v114
    %v149 = vunpack.c.h.b16 %v114
    %v150 = vunpack.c.l.b16 %v115
    %v151 = vunpack.c.h.b16 %v115
    %v152 = vunpack.c.l.b16 %v116
    %v153 = vunpack.c.h.b16 %v116
    %v154 = vunpack.c.l.b16 %v117
    %v155 = vunpack.c.h.b16 %v117
    %v156 = vunpack.c.l.b16 %v118
    %v157 = vunpack.c.h.b16 %v118
    %v158 = vunpack.c.l.b16 %v119
    %v159 = vunpack.c.h.b16 %v119
    %v160 = vunpack.c.l.b16 %v120
    %v161 = vunpack.c.h.b16 %v120
    %v162 = vunpack.c.l.b16 %v121
    %v163 = vunpack.c.h.b16 %v121
    %v164 = vunpack.c.l.b16 %v122
    %v165 = vunpack.c.h.b16 %v122
    %v166 = vunpack.c.l.b16 %v123
    %v167 = vunpack.c.h.b16 %v123
    %v168 = vunpack.c.l.b16 %v124
    %v169 = vunpack.c.h.b16 %v124
    %v170 = vunpack.c.l.b16 %v125
    %v171 = vunpack.c.h.b16 %v125
    %v172 = vunpack.c.l.b16 %v126
    %v173 = vunpack.c.h.b16 %v126
    %v174 = vunpack.c.l.b16 %v127
    %v175 = vunpack.c.h.b16 %v127
    %v176 = vpack.c.b16 %v146, %v144
    %v177 = vpack.c.b16 %v147, %v145
    %v178 = vpack.c.b16 %v150, %v148
    %v179 = vpack.c.b16 %v151, %v149
    %v180 = vpack.c.b16 %v154, %v152
    %v181 = vpack.c.b16 %v155, %v153
    %v182 = vpack.c.b16 %v158, %v156
    %v183 = vpack.c.b16 %v159, %v157
    %v184 = vpack.c.b16 %v162, %v160
    %v185 = vpack.c.b16 %v163, %v161
    %v186 = vpack.c.b16 %v166, %v164
    %v187 = vpack.c.b16 %v167, %v165
    %v188 = vpack.c.b16 %v170, %v168
    %v189 = vpack.c.b16 %v171, %v169
    %v190 = vpack.c.b16 %v174, %v172
    %v191 = vpack.c.b16 %v175, %v173
    %208 = vmatpush.bf16.msra.mxu0 %v190
    %209 = vmatpush.bf16.msra.mxu0 %v188
    %210 = vmatpush.bf16.msra.mxu0 %v186
    %211 = vmatpush.bf16.msra.mxu0 %v184
    %212 = vmatpush.bf16.msra.mxu0 %v182
    %213 = vmatpush.bf16.msra.mxu0 %v180
    %214 = vmatpush.bf16.msra.mxu0 %v178
    %215 = vmatpush.bf16.msra.mxu0 %v176
    %216 = vmatmul.bf16.gmra.mxu0 %v104
    %v217 = vpop.f32.mrf.mxu0
    %v218 = vadd.f32 0.0, %v217
    %v219 = vpop.f32.mrf.mxu0
    %v220 = vadd.f32 0.0, %v219
    %221 = vmatmul.bf16.gmra.mxu0 %v105
    %v222 = vpop.f32.mrf.mxu0
    %v223 = vadd.f32 0.0, %v222
    %v224 = vpop.f32.mrf.mxu0
    %v225 = vadd.f32 0.0, %v224
    %226 = vmatmul.bf16.gmra.mxu0 %v106
    %v227 = vpop.f32.mrf.mxu0
    %v228 = vadd.f32 0.0, %v227
    %v229 = vpop.f32.mrf.mxu0
    %v230 = vadd.f32 0.0, %v229
    %231 = vmatmul.bf16.gmra.mxu0 %v107
    %v232 = vpop.f32.mrf.mxu0
    %v233 = vadd.f32 0.0, %v232
    %v234 = vpop.f32.mrf.mxu0
    %v235 = vadd.f32 0.0, %v234
    %236 = vmatmul.bf16.gmra.mxu0 %v108
    %v237 = vpop.f32.mrf.mxu0
    %v238 = vadd.f32 0.0, %v237
    %v239 = vpop.f32.mrf.mxu0
    %v240 = vadd.f32 0.0, %v239
    %241 = vmatmul.bf16.gmra.mxu0 %v109
    %v242 = vpop.f32.mrf.mxu0
    %v243 = vadd.f32 0.0, %v242
    %v244 = vpop.f32.mrf.mxu0
    %v245 = vadd.f32 0.0, %v244
    %246 = vmatmul.bf16.gmra.mxu0 %v110
    %v247 = vpop.f32.mrf.mxu0
    %v248 = vadd.f32 0.0, %v247
    %v249 = vpop.f32.mrf.mxu0
    %v250 = vadd.f32 0.0, %v249
    %251 = vmatmul.bf16.gmra.mxu0 %v111
    %v252 = vpop.f32.mrf.mxu0
    %v253 = vadd.f32 0.0, %v252
    %v254 = vpop.f32.mrf.mxu0
    %v255 = vadd.f32 0.0, %v254
    %256 = vdwg.mxu0
    %257 = vmatpush.bf16.msra.mxu0 %v191
    %258 = vmatpush.bf16.msra.mxu0 %v189
    %259 = vmatpush.bf16.msra.mxu0 %v187
    %260 = vmatpush.bf16.msra.mxu0 %v185
    %261 = vmatpush.bf16.msra.mxu0 %v183
    %262 = vmatpush.bf16.msra.mxu0 %v181
    %263 = vmatpush.bf16.msra.mxu0 %v179
    %264 = vmatpush.bf16.msra.mxu0 %v177
    %265 = vmatmul.bf16.gmra.mxu0 %v104
    %v266 = vpop.f32.mrf.mxu0
    %v267 = vadd.f32 0.0, %v266
    %v268 = vpop.f32.mrf.mxu0
    %v269 = vadd.f32 0.0, %v268
    %270 = vmatmul.bf16.gmra.mxu0 %v105
    %v271 = vpop.f32.mrf.mxu0
    %v272 = vadd.f32 0.0, %v271
    %v273 = vpop.f32.mrf.mxu0
    %v274 = vadd.f32 0.0, %v273
    %275 = vmatmul.bf16.gmra.mxu0 %v106
    %v276 = vpop.f32.mrf.mxu0
    %v277 = vadd.f32 0.0, %v276
    %v278 = vpop.f32.mrf.mxu0
    %v279 = vadd.f32 0.0, %v278
    %280 = vmatmul.bf16.gmra.mxu0 %v107
    %v281 = vpop.f32.mrf.mxu0
    %v282 = vadd.f32 0.0, %v281
    %v283 = vpop.f32.mrf.mxu0
    %v284 = vadd.f32 0.0, %v283
    %285 = vmatmul.bf16.gmra.mxu0 %v108
    %v286 = vpop.f32.mrf.mxu0
    %v287 = vadd.f32 0.0, %v286
    %v288 = vpop.f32.mrf.mxu0
    %v289 = vadd.f32 0.0, %v288
    %290 = vmatmul.bf16.gmra.mxu0 %v109
    %v291 = vpop.f32.mrf.mxu0
    %v292 = vadd.f32 0.0, %v291
    %v293 = vpop.f32.mrf.mxu0
    %v294 = vadd.f32 0.0, %v293
    %295 = vmatmul.bf16.gmra.mxu0 %v110
    %v296 = vpop.f32.mrf.mxu0
    %v297 = vadd.f32 0.0, %v296
    %v298 = vpop.f32.mrf.mxu0
    %v299 = vadd.f32 0.0, %v298
    %300 = vmatmul.bf16.gmra.mxu0 %v111
    %v301 = vpop.f32.mrf.mxu0
    %v302 = vadd.f32 0.0, %v301
    %v303 = vpop.f32.mrf.mxu0
    %v304 = vadd.f32 0.0, %v303
    %305 = vdwg.mxu0
    %v306 = vadd.f32 %v218, %v220
    %v307 = vadd.f32 %v306, %v223
    %v308 = vadd.f32 %v307, %v225
    %v309 = vadd.f32 %v308, %v228
    %v310 = vadd.f32 %v309, %v230
    %v311 = vadd.f32 %v310, %v233
    %v312 = vadd.f32 %v311, %v235
    %v313 = vadd.f32 %v312, %v238
    %v314 = vadd.f32 %v313, %v240
    %v315 = vadd.f32 %v314, %v243
    %v316 = vadd.f32 %v315, %v245
    %v317 = vadd.f32 %v316, %v248
    %v318 = vadd.f32 %v317, %v250
    %v319 = vadd.f32 %v318, %v253
    %v320 = vadd.f32 %v319, %v255
    %v321 = vrot.slane %v320, 4
    %v322 = vadd.f32 %v320, %v321
    %v323 = vrot.slane %v322, 2
    %v324 = vadd.f32 %v322, %v323
    %v325 = vrot.slane %v324, 1
    %v326 = vadd.f32 %v324, %v325
    %v327 = vadd.f32 %v267, %v269
    %v328 = vadd.f32 %v327, %v272
    %v329 = vadd.f32 %v328, %v274
    %v330 = vadd.f32 %v329, %v277
    %v331 = vadd.f32 %v330, %v279
    %v332 = vadd.f32 %v331, %v282
    %v333 = vadd.f32 %v332, %v284
    %v334 = vadd.f32 %v333, %v287
    %v335 = vadd.f32 %v334, %v289
    %v336 = vadd.f32 %v335, %v292
    %v337 = vadd.f32 %v336, %v294
    %v338 = vadd.f32 %v337, %v297
    %v339 = vadd.f32 %v338, %v299
    %v340 = vadd.f32 %v339, %v302
    %v341 = vadd.f32 %v340, %v304
    %v342 = vrot.slane %v341, 4
    %v343 = vadd.f32 %v341, %v342
    %v344 = vrot.slane %v343, 2
    %v345 = vadd.f32 %v343, %v344
    %v346 = vrot.slane %v345, 1
    %v347 = vadd.f32 %v345, %v346
    %v348 = vrcp.pop 128.0
    %v349 = vmul.f32 128.0, %v348
    %v350 = vsub.f32 1.0, %v349
    %v351 = vmul.f32 %v348, %v350
    %v352 = vadd.f32 %v348, %v351
    %vm353 = vweird.f32 %v348
    %v354 = vsel %vm353, %v348, %v352
    %v355 = vmul.f32 %v326, %v354
    %v356 = vmul.f32 %v347, %v354
    %v357 = vmul.f32 %v218, %v218
    %v358 = vmul.f32 %v267, %v267
    %v359 = vmul.f32 %v220, %v220
    %v360 = vmul.f32 %v269, %v269
    %v361 = vmul.f32 %v223, %v223
    %v362 = vmul.f32 %v272, %v272
    %v363 = vmul.f32 %v225, %v225
    %v364 = vmul.f32 %v274, %v274
    %v365 = vmul.f32 %v228, %v228
    %v366 = vmul.f32 %v277, %v277
    %v367 = vmul.f32 %v230, %v230
    %v368 = vmul.f32 %v279, %v279
    %v369 = vmul.f32 %v233, %v233
    %v370 = vmul.f32 %v282, %v282
    %v371 = vmul.f32 %v235, %v235
    %v372 = vmul.f32 %v284, %v284
    %v373 = vmul.f32 %v238, %v238
    %v374 = vmul.f32 %v287, %v287
    %v375 = vmul.f32 %v240, %v240
    %v376 = vmul.f32 %v289, %v289
    %v377 = vmul.f32 %v243, %v243
    %v378 = vmul.f32 %v292, %v292
    %v379 = vmul.f32 %v245, %v245
    %v380 = vmul.f32 %v294, %v294
    %v381 = vmul.f32 %v248, %v248
    %v382 = vmul.f32 %v297, %v297
    %v383 = vmul.f32 %v250, %v250
    %v384 = vmul.f32 %v299, %v299
    %v385 = vmul.f32 %v253, %v253
    %v386 = vmul.f32 %v302, %v302
    %v387 = vmul.f32 %v255, %v255
    %v388 = vmul.f32 %v304, %v304
    %v389 = vadd.f32 %v357, %v359
    %v390 = vadd.f32 %v389, %v361
    %v391 = vadd.f32 %v390, %v363
    %v392 = vadd.f32 %v391, %v365
    %v393 = vadd.f32 %v392, %v367
    %v394 = vadd.f32 %v393, %v369
    %v395 = vadd.f32 %v394, %v371
    %v396 = vadd.f32 %v395, %v373
    %v397 = vadd.f32 %v396, %v375
    %v398 = vadd.f32 %v397, %v377
    %v399 = vadd.f32 %v398, %v379
    %v400 = vadd.f32 %v399, %v381
    %v401 = vadd.f32 %v400, %v383
    %v402 = vadd.f32 %v401, %v385
    %v403 = vadd.f32 %v402, %v387
    %v404 = vrot.slane %v403, 4
    %v405 = vadd.f32 %v403, %v404
    %v406 = vrot.slane %v405, 2
    %v407 = vadd.f32 %v405, %v406
    %v408 = vrot.slane %v407, 1
    %v409 = vadd.f32 %v407, %v408
    %v410 = vadd.f32 %v358, %v360
    %v411 = vadd.f32 %v410, %v362
    %v412 = vadd.f32 %v411, %v364
    %v413 = vadd.f32 %v412, %v366
    %v414 = vadd.f32 %v413, %v368
    %v415 = vadd.f32 %v414, %v370
    %v416 = vadd.f32 %v415, %v372
    %v417 = vadd.f32 %v416, %v374
    %v418 = vadd.f32 %v417, %v376
    %v419 = vadd.f32 %v418, %v378
    %v420 = vadd.f32 %v419, %v380
    %v421 = vadd.f32 %v420, %v382
    %v422 = vadd.f32 %v421, %v384
    %v423 = vadd.f32 %v422, %v386
    %v424 = vadd.f32 %v423, %v388
    %v425 = vrot.slane %v424, 4
    %v426 = vadd.f32 %v424, %v425
    %v427 = vrot.slane %v426, 2
    %v428 = vadd.f32 %v426, %v427
    %v429 = vrot.slane %v428, 1
    %v430 = vadd.f32 %v428, %v429
    %v431 = vmul.f32 %v409, %v354
    %v432 = vmul.f32 %v430, %v354
    %v433 = vmul.f32 %v355, %v355
    %v434 = vmul.f32 %v356, %v356
    %v435 = vsub.f32 %v431, %v433
    %v436 = vsub.f32 %v432, %v434
    %v437 = vsub.f32 %v218, %v355
    %v438 = vsub.f32 %v267, %v356
    %v439 = vsub.f32 %v220, %v355
    %v440 = vsub.f32 %v269, %v356
    %v441 = vsub.f32 %v223, %v355
    %v442 = vsub.f32 %v272, %v356
    %v443 = vsub.f32 %v225, %v355
    %v444 = vsub.f32 %v274, %v356
    %v445 = vsub.f32 %v228, %v355
    %v446 = vsub.f32 %v277, %v356
    %v447 = vsub.f32 %v230, %v355
    %v448 = vsub.f32 %v279, %v356
    %v449 = vsub.f32 %v233, %v355
    %v450 = vsub.f32 %v282, %v356
    %v451 = vsub.f32 %v235, %v355
    %v452 = vsub.f32 %v284, %v356
    %v453 = vsub.f32 %v238, %v355
    %v454 = vsub.f32 %v287, %v356
    %v455 = vsub.f32 %v240, %v355
    %v456 = vsub.f32 %v289, %v356
    %v457 = vsub.f32 %v243, %v355
    %v458 = vsub.f32 %v292, %v356
    %v459 = vsub.f32 %v245, %v355
    %v460 = vsub.f32 %v294, %v356
    %v461 = vsub.f32 %v248, %v355
    %v462 = vsub.f32 %v297, %v356
    %v463 = vsub.f32 %v250, %v355
    %v464 = vsub.f32 %v299, %v356
    %v465 = vsub.f32 %v253, %v355
    %v466 = vsub.f32 %v302, %v356
    %v467 = vsub.f32 %v255, %v355
    %v468 = vsub.f32 %v304, %v356
    %v469 = vadd.f32 %v435, 1e-05
    %v470 = vadd.f32 %v436, 1e-05
    %v471 = vrsqrt.pop %v469
    %v472 = vmul.f32 %v471, %v469
    %v473 = vmul.f32 %v472, %v471
    %v474 = vmul.f32 0.5, %v473
    %v475 = vsub.f32 1.5, %v474
    %v476 = vmul.f32 %v471, %v475
    %vm477 = vweird.f32 %v469
    %vm478 = vweird.f32 %v471
    %vm479 = vmor %vm477, %vm478
    %v480 = vsel %vm479, %v471, %v476
    %v481 = vrsqrt.pop %v470
    %v482 = vmul.f32 %v481, %v470
    %v483 = vmul.f32 %v482, %v481
    %v484 = vmul.f32 0.5, %v483
    %v485 = vsub.f32 1.5, %v484
    %v486 = vmul.f32 %v481, %v485
    %vm487 = vweird.f32 %v470
    %vm488 = vweird.f32 %v481
    %vm489 = vmor %vm487, %vm488
    %v490 = vsel %vm489, %v481, %v486
    %v491 = vmul.f32 %v437, %v480
    %v492 = vmul.f32 %v438, %v490
    %v493 = vmul.f32 %v439, %v480
    %v494 = vmul.f32 %v440, %v490
    %v495 = vmul.f32 %v441, %v480
    %v496 = vmul.f32 %v442, %v490
    %v497 = vmul.f32 %v443, %v480
    %v498 = vmul.f32 %v444, %v490
    %v499 = vmul.f32 %v445, %v480
    %v500 = vmul.f32 %v446, %v490
    %v501 = vmul.f32 %v447, %v480
    %v502 = vmul.f32 %v448, %v490
    %v503 = vmul.f32 %v449, %v480
    %v504 = vmul.f32 %v450, %v490
    %v505 = vmul.f32 %v451, %v480
    %v506 = vmul.f32 %v452, %v490
    %v507 = vmul.f32 %v453, %v480
    %v508 = vmul.f32 %v454, %v490
    %v509 = vmul.f32 %v455, %v480
    %v510 = vmul.f32 %v456, %v490
    %v511 = vmul.f32 %v457, %v480
    %v512 = vmul.f32 %v458, %v490
    %v513 = vmul.f32 %v459, %v480
    %v514 = vmul.f32 %v460, %v490
    %v515 = vmul.f32 %v461, %v480
    %v516 = vmul.f32 %v462, %v490
    %v517 = vmul.f32 %v463, %v480
    %v518 = vmul.f32 %v464, %v490
    %v519 = vmul.f32 %v465, %v480
    %v520 = vmul.f32 %v466, %v490
    %v521 = vmul.f32 %v467, %v480
    %v522 = vmul.f32 %v468, %v490
    %v523 = vld [vmem:[#allocation7] sm:$0x3]
    %v525 = vperm.slane %v523, 0
    %v526 = vperm.slane %v523, 1
    %v529 = vmul.f32 %v491, %v525
    %v530 = vmul.f32 %v492, %v526
    %v531 = vmul.f32 %v493, %v525
    %v532 = vmul.f32 %v494, %v526
    %v533 = vmul.f32 %v495, %v525
    %v534 = vmul.f32 %v496, %v526
    %v535 = vmul.f32 %v497, %v525
    %v536 = vmul.f32 %v498, %v526
    %v537 = vmul.f32 %v499, %v525
    %v538 = vmul.f32 %v500, %v526
    %v539 = vmul.f32 %v501, %v525
    %v540 = vmul.f32 %v502, %v526
    %v541 = vmul.f32 %v503, %v525
    %v542 = vmul.f32 %v504, %v526
    %v543 = vmul.f32 %v505, %v525
    %v544 = vmul.f32 %v506, %v526
    %v545 = vmul.f32 %v507, %v525
    %v546 = vmul.f32 %v508, %v526
    %v547 = vmul.f32 %v509, %v525
    %v548 = vmul.f32 %v510, %v526
    %v549 = vmul.f32 %v511, %v525
    %v550 = vmul.f32 %v512, %v526
    %v551 = vmul.f32 %v513, %v525
    %v552 = vmul.f32 %v514, %v526
    %v553 = vmul.f32 %v515, %v525
    %v554 = vmul.f32 %v516, %v526
    %v555 = vmul.f32 %v517, %v525
    %v556 = vmul.f32 %v518, %v526
    %v557 = vmul.f32 %v519, %v525
    %v558 = vmul.f32 %v520, %v526
    %v559 = vmul.f32 %v521, %v525
    %v560 = vmul.f32 %v522, %v526
    %v561 = vld [vmem:[%s3] sm:$0x3]
    %v563 = vperm.slane %v561, 0
    %v564 = vperm.slane %v561, 1
    %v567 = vadd.f32 %v529, %v563
    %v568 = vadd.f32 %v530, %v564
    %v569 = vadd.f32 %v531, %v563
    %v570 = vadd.f32 %v532, %v564
    %v571 = vadd.f32 %v533, %v563
    %v572 = vadd.f32 %v534, %v564
    %v573 = vadd.f32 %v535, %v563
    %v574 = vadd.f32 %v536, %v564
    %v575 = vadd.f32 %v537, %v563
    %v576 = vadd.f32 %v538, %v564
    %v577 = vadd.f32 %v539, %v563
    %v578 = vadd.f32 %v540, %v564
    %v579 = vadd.f32 %v541, %v563
    %v580 = vadd.f32 %v542, %v564
    %v581 = vadd.f32 %v543, %v563
    %v582 = vadd.f32 %v544, %v564
    %v583 = vadd.f32 %v545, %v563
    %v584 = vadd.f32 %v546, %v564
    %v585 = vadd.f32 %v547, %v563
    %v586 = vadd.f32 %v548, %v564
    %v587 = vadd.f32 %v549, %v563
    %v588 = vadd.f32 %v550, %v564
    %v589 = vadd.f32 %v551, %v563
    %v590 = vadd.f32 %v552, %v564
    %v591 = vadd.f32 %v553, %v563
    %v592 = vadd.f32 %v554, %v564
    %v593 = vadd.f32 %v555, %v563
    %v594 = vadd.f32 %v556, %v564
    %v595 = vadd.f32 %v557, %v563
    %v596 = vadd.f32 %v558, %v564
    %v597 = vadd.f32 %v559, %v563
    %v598 = vadd.f32 %v560, %v564
    %v599 = vmax.f32 %v567, 0.0
    %v600 = vmax.f32 %v568, 0.0
    %v601 = vmax.f32 %v569, 0.0
    %v602 = vmax.f32 %v570, 0.0
    %v603 = vmax.f32 %v571, 0.0
    %v604 = vmax.f32 %v572, 0.0
    %v605 = vmax.f32 %v573, 0.0
    %v606 = vmax.f32 %v574, 0.0
    %v607 = vmax.f32 %v575, 0.0
    %v608 = vmax.f32 %v576, 0.0
    %v609 = vmax.f32 %v577, 0.0
    %v610 = vmax.f32 %v578, 0.0
    %v611 = vmax.f32 %v579, 0.0
    %v612 = vmax.f32 %v580, 0.0
    %v613 = vmax.f32 %v581, 0.0
    %v614 = vmax.f32 %v582, 0.0
    %v615 = vmax.f32 %v583, 0.0
    %v616 = vmax.f32 %v584, 0.0
    %v617 = vmax.f32 %v585, 0.0
    %v618 = vmax.f32 %v586, 0.0
    %v619 = vmax.f32 %v587, 0.0
    %v620 = vmax.f32 %v588, 0.0
    %v621 = vmax.f32 %v589, 0.0
    %v622 = vmax.f32 %v590, 0.0
    %v623 = vmax.f32 %v591, 0.0
    %v624 = vmax.f32 %v592, 0.0
    %v625 = vmax.f32 %v593, 0.0
    %v626 = vmax.f32 %v594, 0.0
    %v627 = vmax.f32 %v595, 0.0
    %v628 = vmax.f32 %v596, 0.0
    %v629 = vmax.f32 %v597, 0.0
    %v630 = vmax.f32 %v598, 0.0
    %v631 = vpack.c.bf16 %v601, %v599
    %v632 = vpack.c.bf16 %v602, %v600
    %v633 = vpack.c.bf16 %v605, %v603
    %v634 = vpack.c.bf16 %v606, %v604
    %v635 = vpack.c.bf16 %v609, %v607
    %v636 = vpack.c.bf16 %v610, %v608
    %v637 = vpack.c.bf16 %v613, %v611
    %v638 = vpack.c.bf16 %v614, %v612
    %v639 = vpack.c.bf16 %v617, %v615
    %v640 = vpack.c.bf16 %v618, %v616
    %v641 = vpack.c.bf16 %v621, %v619
    %v642 = vpack.c.bf16 %v622, %v620
    %v643 = vpack.c.bf16 %v625, %v623
    %v644 = vpack.c.bf16 %v626, %v624
    %v645 = vpack.c.bf16 %v629, %v627
    %v646 = vpack.c.bf16 %v630, %v628
    %v647 = vld [vmem:[#allocation8] sm:$0xf]
    %v648 = vld [vmem:[#allocation8 + $0x4] sm:$0xf]
    %v649 = vld [vmem:[#allocation8 + $0x8] sm:$0xf]
    %v650 = vld [vmem:[#allocation8 + $0xc] sm:$0xf]
    %v651 = vld [vmem:[#allocation8 + $0x10] sm:$0xf]
    %v652 = vld [vmem:[#allocation8 + $0x14] sm:$0xf]
    %v653 = vld [vmem:[#allocation8 + $0x18] sm:$0xf]
    %v654 = vld [vmem:[#allocation8 + $0x1c] sm:$0xf]
    %v655 = vld [vmem:[#allocation8 + $0x20] sm:$0xf]
    %v656 = vld [vmem:[#allocation8 + $0x24] sm:$0xf]
    %v657 = vld [vmem:[#allocation8 + $0x28] sm:$0xf]
    %v658 = vld [vmem:[#allocation8 + $0x2c] sm:$0xf]
    %v659 = vld [vmem:[#allocation8 + $0x30] sm:$0xf]
    %v660 = vld [vmem:[#allocation8 + $0x34] sm:$0xf]
    %v661 = vld [vmem:[#allocation8 + $0x38] sm:$0xf]
    %v662 = vld [vmem:[#allocation8 + $0x3c] sm:$0xf]
    %v663 = vld [vmem:[#allocation8 + $0x40] sm:$0xf]
    %v664 = vld [vmem:[#allocation8 + $0x44] sm:$0xf]
    %v665 = vld [vmem:[#allocation8 + $0x48] sm:$0xf]
    %v666 = vld [vmem:[#allocation8 + $0x4c] sm:$0xf]
    %v667 = vld [vmem:[#allocation8 + $0x50] sm:$0xf]
    %v668 = vld [vmem:[#allocation8 + $0x54] sm:$0xf]
    %v669 = vld [vmem:[#allocation8 + $0x58] sm:$0xf]
    %v670 = vld [vmem:[#allocation8 + $0x5c] sm:$0xf]
    %v671 = vld [vmem:[#allocation8 + $0x60] sm:$0xf]
    %v672 = vld [vmem:[#allocation8 + $0x64] sm:$0xf]
    %v673 = vld [vmem:[#allocation8 + $0x68] sm:$0xf]
    %v674 = vld [vmem:[#allocation8 + $0x6c] sm:$0xf]
    %v675 = vld [vmem:[#allocation8 + $0x70] sm:$0xf]
    %v676 = vld [vmem:[#allocation8 + $0x74] sm:$0xf]
    %v677 = vld [vmem:[#allocation8 + $0x78] sm:$0xf]
    %v678 = vld [vmem:[#allocation8 + $0x7c] sm:$0xf]
    %v711 = vunpack.c.l.b16 %v647
    %v712 = vunpack.c.l.b16 %v648
    %v713 = vunpack.c.l.b16 %v649
    %v714 = vunpack.c.l.b16 %v650
    %v715 = vunpack.c.l.b16 %v651
    %v716 = vunpack.c.l.b16 %v652
    %v717 = vunpack.c.l.b16 %v653
    %v718 = vunpack.c.l.b16 %v654
    %v719 = vunpack.c.l.b16 %v655
    %v720 = vunpack.c.l.b16 %v656
    %v721 = vunpack.c.l.b16 %v657
    %v722 = vunpack.c.l.b16 %v658
    %v723 = vunpack.c.l.b16 %v659
    %v724 = vunpack.c.l.b16 %v660
    %v725 = vunpack.c.l.b16 %v661
    %v726 = vunpack.c.l.b16 %v662
    %v727 = vunpack.c.l.b16 %v663
    %v728 = vunpack.c.l.b16 %v664
    %v729 = vunpack.c.l.b16 %v665
    %v730 = vunpack.c.l.b16 %v666
    %v731 = vunpack.c.l.b16 %v667
    %v732 = vunpack.c.l.b16 %v668
    %v733 = vunpack.c.l.b16 %v669
    %v734 = vunpack.c.l.b16 %v670
    %v735 = vunpack.c.l.b16 %v671
    %v736 = vunpack.c.l.b16 %v672
    %v737 = vunpack.c.l.b16 %v673
    %v738 = vunpack.c.l.b16 %v674
    %v739 = vunpack.c.l.b16 %v675
    %v740 = vunpack.c.l.b16 %v676
    %v741 = vunpack.c.l.b16 %v677
    %v742 = vunpack.c.l.b16 %v678
    %v743 = vpack.c.b16 %v712, %v711
    %v744 = vpack.c.b16 %v714, %v713
    %v745 = vpack.c.b16 %v716, %v715
    %v746 = vpack.c.b16 %v718, %v717
    %v747 = vpack.c.b16 %v720, %v719
    %v748 = vpack.c.b16 %v722, %v721
    %v749 = vpack.c.b16 %v724, %v723
    %v750 = vpack.c.b16 %v726, %v725
    %v751 = vpack.c.b16 %v728, %v727
    %v752 = vpack.c.b16 %v730, %v729
    %v753 = vpack.c.b16 %v732, %v731
    %v754 = vpack.c.b16 %v734, %v733
    %v755 = vpack.c.b16 %v736, %v735
    %v756 = vpack.c.b16 %v738, %v737
    %v757 = vpack.c.b16 %v740, %v739
    %v758 = vpack.c.b16 %v742, %v741
    %775 = vmatpush.bf16.msra.mxu0 %v750
    %776 = vmatpush.bf16.msra.mxu0 %v749
    %777 = vmatpush.bf16.msra.mxu0 %v748
    %778 = vmatpush.bf16.msra.mxu0 %v747
    %779 = vmatpush.bf16.msra.mxu0 %v746
    %780 = vmatpush.bf16.msra.mxu0 %v745
    %781 = vmatpush.bf16.msra.mxu0 %v744
    %782 = vmatpush.bf16.msra.mxu0 %v743
    %783 = vmatmul.bf16.gmra.mxu0 %v631
    %v784 = vpop.f32.mrf.mxu0
    %v785 = vadd.f32 0.0, %v784
    %v786 = vpop.f32.mrf.mxu0
    %v787 = vadd.f32 0.0, %v786
    %788 = vmatmul.bf16.gmra.mxu0 %v633
    %v789 = vpop.f32.mrf.mxu0
    %v790 = vadd.f32 0.0, %v789
    %v791 = vpop.f32.mrf.mxu0
    %v792 = vadd.f32 0.0, %v791
    %793 = vmatmul.bf16.gmra.mxu0 %v635
    %v794 = vpop.f32.mrf.mxu0
    %v795 = vadd.f32 0.0, %v794
    %v796 = vpop.f32.mrf.mxu0
    %v797 = vadd.f32 0.0, %v796
    %798 = vmatmul.bf16.gmra.mxu0 %v637
    %v799 = vpop.f32.mrf.mxu0
    %v800 = vadd.f32 0.0, %v799
    %v801 = vpop.f32.mrf.mxu0
    %v802 = vadd.f32 0.0, %v801
    %803 = vmatmul.bf16.gmra.mxu0 %v639
    %v804 = vpop.f32.mrf.mxu0
    %v805 = vadd.f32 0.0, %v804
    %v806 = vpop.f32.mrf.mxu0
    %v807 = vadd.f32 0.0, %v806
    %808 = vmatmul.bf16.gmra.mxu0 %v641
    %v809 = vpop.f32.mrf.mxu0
    %v810 = vadd.f32 0.0, %v809
    %v811 = vpop.f32.mrf.mxu0
    %v812 = vadd.f32 0.0, %v811
    %813 = vmatmul.bf16.gmra.mxu0 %v643
    %v814 = vpop.f32.mrf.mxu0
    %v815 = vadd.f32 0.0, %v814
    %v816 = vpop.f32.mrf.mxu0
    %v817 = vadd.f32 0.0, %v816
    %818 = vmatmul.bf16.gmra.mxu0 %v645
    %v819 = vpop.f32.mrf.mxu0
    %v820 = vadd.f32 0.0, %v819
    %v821 = vpop.f32.mrf.mxu0
    %v822 = vadd.f32 0.0, %v821
    %823 = vdwg.mxu0
    %824 = vmatpush.bf16.msra.mxu0 %v758
    %825 = vmatpush.bf16.msra.mxu0 %v757
    %826 = vmatpush.bf16.msra.mxu0 %v756
    %827 = vmatpush.bf16.msra.mxu0 %v755
    %828 = vmatpush.bf16.msra.mxu0 %v754
    %829 = vmatpush.bf16.msra.mxu0 %v753
    %830 = vmatpush.bf16.msra.mxu0 %v752
    %831 = vmatpush.bf16.msra.mxu0 %v751
    %832 = vmatmul.bf16.gmra.mxu0 %v632
    %v833 = vpop.f32.mrf.mxu0
    %v834 = vadd.f32 %v785, %v833
    %v835 = vpop.f32.mrf.mxu0
    %v836 = vadd.f32 %v787, %v835
    %837 = vmatmul.bf16.gmra.mxu0 %v634
    %v838 = vpop.f32.mrf.mxu0
    %v839 = vadd.f32 %v790, %v838
    %v840 = vpop.f32.mrf.mxu0
    %v841 = vadd.f32 %v792, %v840
    %842 = vmatmul.bf16.gmra.mxu0 %v636
    %v843 = vpop.f32.mrf.mxu0
    %v844 = vadd.f32 %v795, %v843
    %v845 = vpop.f32.mrf.mxu0
    %v846 = vadd.f32 %v797, %v845
    %847 = vmatmul.bf16.gmra.mxu0 %v638
    %v848 = vpop.f32.mrf.mxu0
    %v849 = vadd.f32 %v800, %v848
    %v850 = vpop.f32.mrf.mxu0
    %v851 = vadd.f32 %v802, %v850
    %852 = vmatmul.bf16.gmra.mxu0 %v640
    %v853 = vpop.f32.mrf.mxu0
    %v854 = vadd.f32 %v805, %v853
    %v855 = vpop.f32.mrf.mxu0
    %v856 = vadd.f32 %v807, %v855
    %857 = vmatmul.bf16.gmra.mxu0 %v642
    %v858 = vpop.f32.mrf.mxu0
    %v859 = vadd.f32 %v810, %v858
    %v860 = vpop.f32.mrf.mxu0
    %v861 = vadd.f32 %v812, %v860
    %862 = vmatmul.bf16.gmra.mxu0 %v644
    %v863 = vpop.f32.mrf.mxu0
    %v864 = vadd.f32 %v815, %v863
    %v865 = vpop.f32.mrf.mxu0
    %v866 = vadd.f32 %v817, %v865
    %867 = vmatmul.bf16.gmra.mxu0 %v646
    %v868 = vpop.f32.mrf.mxu0
    %v869 = vadd.f32 %v820, %v868
    %v870 = vpop.f32.mrf.mxu0
    %v871 = vadd.f32 %v822, %v870
    %872 = vdwg.mxu0
    %v873 = vadd.f32 %v834, %v836
    %v874 = vadd.f32 %v873, %v839
    %v875 = vadd.f32 %v874, %v841
    %v876 = vadd.f32 %v875, %v844
    %v877 = vadd.f32 %v876, %v846
    %v878 = vadd.f32 %v877, %v849
    %v879 = vadd.f32 %v878, %v851
    %v880 = vadd.f32 %v879, %v854
    %v881 = vadd.f32 %v880, %v856
    %v882 = vadd.f32 %v881, %v859
    %v883 = vadd.f32 %v882, %v861
    %v884 = vadd.f32 %v883, %v864
    %v885 = vadd.f32 %v884, %v866
    %v886 = vadd.f32 %v885, %v869
    %v887 = vadd.f32 %v886, %v871
    %v888 = vrot.slane %v887, 4
    %v889 = vadd.f32 %v887, %v888
    %v890 = vrot.slane %v889, 2
    %v891 = vadd.f32 %v889, %v890
    %v892 = vrot.slane %v891, 1
    %v893 = vadd.f32 %v891, %v892
    %v894 = vmul.f32 %v893, %v354
    %v895 = vmul.f32 %v834, %v834
    %v896 = vmul.f32 %v836, %v836
    %v897 = vmul.f32 %v839, %v839
    %v898 = vmul.f32 %v841, %v841
    %v899 = vmul.f32 %v844, %v844
    %v900 = vmul.f32 %v846, %v846
    %v901 = vmul.f32 %v849, %v849
    %v902 = vmul.f32 %v851, %v851
    %v903 = vmul.f32 %v854, %v854
    %v904 = vmul.f32 %v856, %v856
    %v905 = vmul.f32 %v859, %v859
    %v906 = vmul.f32 %v861, %v861
    %v907 = vmul.f32 %v864, %v864
    %v908 = vmul.f32 %v866, %v866
    %v909 = vmul.f32 %v869, %v869
    %v910 = vmul.f32 %v871, %v871
    %v911 = vadd.f32 %v895, %v896
    %v912 = vadd.f32 %v911, %v897
    %v913 = vadd.f32 %v912, %v898
    %v914 = vadd.f32 %v913, %v899
    %v915 = vadd.f32 %v914, %v900
    %v916 = vadd.f32 %v915, %v901
    %v917 = vadd.f32 %v916, %v902
    %v918 = vadd.f32 %v917, %v903
    %v919 = vadd.f32 %v918, %v904
    %v920 = vadd.f32 %v919, %v905
    %v921 = vadd.f32 %v920, %v906
    %v922 = vadd.f32 %v921, %v907
    %v923 = vadd.f32 %v922, %v908
    %v924 = vadd.f32 %v923, %v909
    %v925 = vadd.f32 %v924, %v910
    %v926 = vrot.slane %v925, 4
    %v927 = vadd.f32 %v925, %v926
    %v928 = vrot.slane %v927, 2
    %v929 = vadd.f32 %v927, %v928
    %v930 = vrot.slane %v929, 1
    %v931 = vadd.f32 %v929, %v930
    %v932 = vmul.f32 %v931, %v354
    %v933 = vmul.f32 %v894, %v894
    %v934 = vsub.f32 %v932, %v933
    %v935 = vsub.f32 %v834, %v894
    %v936 = vsub.f32 %v836, %v894
    %v937 = vsub.f32 %v839, %v894
    %v938 = vsub.f32 %v841, %v894
    %v939 = vsub.f32 %v844, %v894
    %v940 = vsub.f32 %v846, %v894
    %v941 = vsub.f32 %v849, %v894
    %v942 = vsub.f32 %v851, %v894
    %v943 = vsub.f32 %v854, %v894
    %v944 = vsub.f32 %v856, %v894
    %v945 = vsub.f32 %v859, %v894
    %v946 = vsub.f32 %v861, %v894
    %v947 = vsub.f32 %v864, %v894
    %v948 = vsub.f32 %v866, %v894
    %v949 = vsub.f32 %v869, %v894
    %v950 = vsub.f32 %v871, %v894
    %v951 = vadd.f32 %v934, 1e-05
    %v952 = vrsqrt.pop %v951
    %v953 = vmul.f32 %v952, %v951
    %v954 = vmul.f32 %v953, %v952
    %v955 = vmul.f32 0.5, %v954
    %v956 = vsub.f32 1.5, %v955
    %v957 = vmul.f32 %v952, %v956
    %vm958 = vweird.f32 %v951
    %vm959 = vweird.f32 %v952
    %vm960 = vmor %vm958, %vm959
    %v961 = vsel %vm960, %v952, %v957
    %v962 = vmul.f32 %v935, %v961
    %v963 = vmul.f32 %v936, %v961
    %v964 = vmul.f32 %v937, %v961
    %v965 = vmul.f32 %v938, %v961
    %v966 = vmul.f32 %v939, %v961
    %v967 = vmul.f32 %v940, %v961
    %v968 = vmul.f32 %v941, %v961
    %v969 = vmul.f32 %v942, %v961
    %v970 = vmul.f32 %v943, %v961
    %v971 = vmul.f32 %v944, %v961
    %v972 = vmul.f32 %v945, %v961
    %v973 = vmul.f32 %v946, %v961
    %v974 = vmul.f32 %v947, %v961
    %v975 = vmul.f32 %v948, %v961
    %v976 = vmul.f32 %v949, %v961
    %v977 = vmul.f32 %v950, %v961
    %v978 = vld [vmem:[%s5] sm:$0x1]
    %v980 = vperm.slane %v978, 0
    %v982 = vmul.f32 %v962, %v980
    %v983 = vmul.f32 %v963, %v980
    %v984 = vmul.f32 %v964, %v980
    %v985 = vmul.f32 %v965, %v980
    %v986 = vmul.f32 %v966, %v980
    %v987 = vmul.f32 %v967, %v980
    %v988 = vmul.f32 %v968, %v980
    %v989 = vmul.f32 %v969, %v980
    %v990 = vmul.f32 %v970, %v980
    %v991 = vmul.f32 %v971, %v980
    %v992 = vmul.f32 %v972, %v980
    %v993 = vmul.f32 %v973, %v980
    %v994 = vmul.f32 %v974, %v980
    %v995 = vmul.f32 %v975, %v980
    %v996 = vmul.f32 %v976, %v980
    %v997 = vmul.f32 %v977, %v980
    %v998 = vld [vmem:[%s6] sm:$0x1]
    %v1000 = vperm.slane %v998, 0
    %v1002 = vadd.f32 %v982, %v1000
    %v1003 = vadd.f32 %v983, %v1000
    %v1004 = vadd.f32 %v984, %v1000
    %v1005 = vadd.f32 %v985, %v1000
    %v1006 = vadd.f32 %v986, %v1000
    %v1007 = vadd.f32 %v987, %v1000
    %v1008 = vadd.f32 %v988, %v1000
    %v1009 = vadd.f32 %v989, %v1000
    %v1010 = vadd.f32 %v990, %v1000
    %v1011 = vadd.f32 %v991, %v1000
    %v1012 = vadd.f32 %v992, %v1000
    %v1013 = vadd.f32 %v993, %v1000
    %v1014 = vadd.f32 %v994, %v1000
    %v1015 = vadd.f32 %v995, %v1000
    %v1016 = vadd.f32 %v996, %v1000
    %v1017 = vadd.f32 %v997, %v1000
    %v1018 = vadd.f32 %v1002, %v88
    %v1019 = vadd.f32 %v1003, %v89
    %v1020 = vadd.f32 %v1004, %v90
    %v1021 = vadd.f32 %v1005, %v91
    %v1022 = vadd.f32 %v1006, %v92
    %v1023 = vadd.f32 %v1007, %v93
    %v1024 = vadd.f32 %v1008, %v94
    %v1025 = vadd.f32 %v1009, %v95
    %v1026 = vadd.f32 %v1010, %v96
    %v1027 = vadd.f32 %v1011, %v97
    %v1028 = vadd.f32 %v1012, %v98
    %v1029 = vadd.f32 %v1013, %v99
    %v1030 = vadd.f32 %v1014, %v100
    %v1031 = vadd.f32 %v1015, %v101
    %v1032 = vadd.f32 %v1016, %v102
    %v1033 = vadd.f32 %v1017, %v103
    %v1034 = vmax.f32 %v1018, 0.0
    %v1035 = vmax.f32 %v1019, 0.0
    %v1036 = vmax.f32 %v1020, 0.0
    %v1037 = vmax.f32 %v1021, 0.0
    %v1038 = vmax.f32 %v1022, 0.0
    %v1039 = vmax.f32 %v1023, 0.0
    %v1040 = vmax.f32 %v1024, 0.0
    %v1041 = vmax.f32 %v1025, 0.0
    %v1042 = vmax.f32 %v1026, 0.0
    %v1043 = vmax.f32 %v1027, 0.0
    %v1044 = vmax.f32 %v1028, 0.0
    %v1045 = vmax.f32 %v1029, 0.0
    %v1046 = vmax.f32 %v1030, 0.0
    %v1047 = vmax.f32 %v1031, 0.0
    %v1048 = vmax.f32 %v1032, 0.0
    %v1049 = vmax.f32 %v1033, 0.0
    %1050 = vst [vmem:[#allocation10] sm:$0xff] %v1034
    %1051 = vst [vmem:[#allocation10 + $0x8] sm:$0xff] %v1035
    %1052 = vst [vmem:[#allocation10 + $0x10] sm:$0xff] %v1036
    %1053 = vst [vmem:[#allocation10 + $0x18] sm:$0xff] %v1037
    %1054 = vst [vmem:[#allocation10 + $0x20] sm:$0xff] %v1038
    %1055 = vst [vmem:[#allocation10 + $0x28] sm:$0xff] %v1039
    %1056 = vst [vmem:[#allocation10 + $0x30] sm:$0xff] %v1040
    %1057 = vst [vmem:[#allocation10 + $0x38] sm:$0xff] %v1041
    %1058 = vst [vmem:[#allocation10 + $0x40] sm:$0xff] %v1042
    %1059 = vst [vmem:[#allocation10 + $0x48] sm:$0xff] %v1043
    %1060 = vst [vmem:[#allocation10 + $0x50] sm:$0xff] %v1044
    %1061 = vst [vmem:[#allocation10 + $0x58] sm:$0xff] %v1045
    %1062 = vst [vmem:[#allocation10 + $0x60] sm:$0xff] %v1046
    %1063 = vst [vmem:[#allocation10 + $0x68] sm:$0xff] %v1047
    %1064 = vst [vmem:[#allocation10 + $0x70] sm:$0xff] %v1048
    %1065 = vst [vmem:[#allocation10 + $0x78] sm:$0xff] %v1049
    // Predicated region
    $region46: #{tpu_custom_call.1} parent=1 // pred_check
      _
    $region47: #{tpu_custom_call.1} parent=1 // pred_check_branch
      %1067 = sbr.rel (0) target = $region49
    $region48: #{tpu_custom_call.1} parent=1 // pred_region
      %1069 = vsyncadd [#allocation4], 0
      %s1070 = sshll.u32 [#allocation10], 4
      %s1071 = int_to_ptr.vmem [resolvable:$true] %s1070
      %s1072 = sshll.u32 %s7, 4
      %s1073 = int_to_ptr.hbm [resolvable:$true] %s1072
      %1078 = dma.vmem_to_hbm [thread:$0]  %s1071, 2048, %s1073, [#allocation4], 128, 128, 8
    $region49: #{tpu_custom_call.1} parent=1 // pred_fallthru
      _
    // Predicated region
    $region50: #{tpu_custom_call.1} parent=1 // pred_check
      _
    $region51: #{tpu_custom_call.1} parent=1 // pred_check_branch
      %1080 = sbr.rel (0) target = $region53
    $region52: #{tpu_custom_call.1} parent=1 // pred_region
      %1082 = dma.done [#allocation4], 2048
    $region53: #{tpu_custom_call.1} parent=1 // pred_fallthru
      _
    %1083 = vsyncpa [#allocation3], 1
    %1084 = vsyncpa [#allocation6], 1
    %1085 = vsyncpa [#allocation9], 1
    %1086 = vsyncpa [#allocation4], 1

</llo_original>
